<compile_context>
chip_gen: v7x
topology: tpu7x:2x2x1
jax: 0.10.0
libtpu: 0.0.40
codegen_flags: <defaults>
</compile_context>

<pallas_src>
import jax
import jax.numpy as jnp
from jax.experimental import pallas as pl
from jax.experimental.pallas import tpu as pltpu


def _round_up(x, m):
    return (x + m - 1) // m * m


# ----------------------------- Pallas kernels ------------------------------ #
def stats_kernel(x_ref, s1_ref, s2_ref):
    """Pass 1: per-row (row = one (n,c) pair) sum and sum-of-squares.

    grid = (row_tiles, lane_tiles); lane (reduction) axis is last/"arbitrary".
    s1/s2 output blocks are constant along the lane axis -> VMEM-resident
    accumulators, zero-initialized at lane step 0.
    """
    @pl.when(pl.program_id(1) == 0)
    def _():
        s1_ref[...] = jnp.zeros_like(s1_ref)
        s2_ref[...] = jnp.zeros_like(s2_ref)

    x = x_ref[...].astype(jnp.float32)
    s1_ref[...] += jnp.sum(x, axis=-1, keepdims=True)
    s2_ref[...] += jnp.sum(x * x, axis=-1, keepdims=True)


def apply_kernel(x_ref, a_ref, b_ref, o_ref):
    """Pass 2: single fused per-row FMA  o = A*x + B
    where A = gamma*scale and B = gamma*scale*loc + beta (folded in wrapper)."""
    x = x_ref[...].astype(jnp.float32)
    o_ref[...] = (a_ref[...] * x + b_ref[...]).astype(o_ref.dtype)


# ------------------------------ JAX glue ------------------------------------ #
def l2normalize(v, eps=1e-4):
    return v / (jnp.linalg.norm(v) + eps)


def spectral_norm_weight(w, u):
    """One power iteration, identical to SpectralNorm._update_u_v (1 iteration)."""
    v = l2normalize(jnp.matmul(w.T, u))
    u_new = l2normalize(jnp.matmul(w, v))
    sigma = jnp.dot(u_new, jnp.matmul(w, v))
    return w / sigma


def conditional_actnorm2d(x, y, w_gamma, w_beta, u_gamma, u_beta):
    """x: (N, C, H, W) NCHW, y: (N, num_classes). Returns (N, C, H, W)."""
    N, C, H, W = x.shape
    HW = H * W
    R = N * C

    # ---- tiling: lane-dense (multiple of 128) last dim, full-sublane rows ----
    lane_tile = min(512, _round_up(HW, 128))
    HW_pad = _round_up(HW, lane_tile)
    row_tile = min(256, _round_up(R, 8))
    R_pad = _round_up(R, row_tile)

    x2 = x.reshape(R, HW)
    pad_r, pad_l = R_pad - R, HW_pad - HW
    if pad_r or pad_l:
        # zero padding: contributes 0 to both sum and sum-of-squares.
        x2 = jnp.pad(x2, ((0, pad_r), (0, pad_l)))

    grid = (R_pad // row_tile, HW_pad // lane_tile)
    cp_stats = pltpu.CompilerParams(
        dimension_semantics=("parallel", "arbitrary"),
        vmem_limit_bytes=32 * 1024 * 1024,
    )
    cp_apply = pltpu.CompilerParams(
        dimension_semantics=("parallel", "parallel"),
        vmem_limit_bytes=32 * 1024 * 1024,
    )

    # ---------------------- pass 1: streaming statistics --------------------- #
    s1, s2 = pl.pallas_call(
        stats_kernel,
        out_shape=(
            jax.ShapeDtypeStruct((R_pad, 1), jnp.float32),
            jax.ShapeDtypeStruct((R_pad, 1), jnp.float32),
        ),
        grid=grid,
        in_specs=[pl.BlockSpec((row_tile, lane_tile), lambda r, t: (r, t))],
        out_specs=(
            pl.BlockSpec((row_tile, 1), lambda r, t: (r, 0)),
            pl.BlockSpec((row_tile, 1), lambda r, t: (r, 0)),
        ),
        compiler_params=cp_stats,
    )(x2)

    # ------------------ tiny finalize + conditional affine (JAX) ------------- #
    n = N * HW  # true per-channel element count (padding contributed zeros)
    s1c = s1[:R, 0].reshape(N, C).sum(axis=0)  # per-channel sum
    s2c = s2[:R, 0].reshape(N, C).sum(axis=0)  # per-channel sum of squares
    mean = s1c / n
    # unbiased variance (torch.std default ddof=1), one-pass form; clamp guards
    # against tiny negative values from f32 cancellation.
    var = (s2c - s1c * s1c / n) / (n - 1)
    std = jnp.sqrt(jnp.maximum(var, 0.0))
    scale = 1.0 / (std + 1e-6)
    loc = -mean

    wg = spectral_norm_weight(w_gamma.astype(jnp.float32), u_gamma.astype(jnp.float32))
    wb = spectral_norm_weight(w_beta.astype(jnp.float32), u_beta.astype(jnp.float32))
    yf = y.astype(jnp.float32)
    gamma = yf @ wg.T + 1.0          # (N, C)
    beta = yf @ wb.T                 # (N, C)

    # Fold ActNorm + conditional affine into one per-(n,c) FMA.
    A = gamma * scale[None, :]                      # (N, C)
    B = A * loc[None, :] + beta                     # (N, C)
    A_rows = A.reshape(R, 1)
    B_rows = B.reshape(R, 1)
    if pad_r:
        A_rows = jnp.pad(A_rows, ((0, pad_r), (0, 0)))
        B_rows = jnp.pad(B_rows, ((0, pad_r), (0, 0)))

    # ------------------------ pass 2: apply o = A*x + B ---------------------- #
    out2 = pl.pallas_call(
        apply_kernel,
        out_shape=jax.ShapeDtypeStruct((R_pad, HW_pad), x.dtype),
        grid=grid,
        in_specs=[
            pl.BlockSpec((row_tile, lane_tile), lambda r, t: (r, t)),
            pl.BlockSpec((row_tile, 1), lambda r, t: (r, 0)),
            pl.BlockSpec((row_tile, 1), lambda r, t: (r, 0)),
        ],
        out_specs=pl.BlockSpec((row_tile, lane_tile), lambda r, t: (r, t)),
        compiler_params=cp_apply,
    )(x2, A_rows, B_rows)

    return out2[:R, :HW].reshape(N, C, H, W)


# Pure-JAX reference mirroring the PyTorch forward (silent sanity check).
def reference(x, y, w_gamma, w_beta, u_gamma, u_beta):
    N, C, H, W = x.shape
    flat = jnp.transpose(x, (1, 0, 2, 3)).reshape(C, -1)
    mean = flat.mean(axis=1)
    std = jnp.std(flat, axis=1, ddof=1)  # torch.std -> unbiased
    loc = -mean
    scale = 1.0 / (std + 1e-6)
    h = scale[None, :, None, None] * (x + loc[None, :, None, None])
    wg = spectral_norm_weight(w_gamma, u_gamma)
    wb = spectral_norm_weight(w_beta, u_beta)
    gamma = y @ wg.T + 1.0
    beta = y @ wb.T
    return gamma[:, :, None, None] * h + beta[:, :, None, None]


if __name__ == "__main__":
    # TODO(synk): the PyTorch 'initialized' buffer / in-place nn.Parameter update
    # is stateful; here the data-dependent ActNorm init is recomputed functionally
    # on every call (exactly the first-forward semantics).
    N, C, H, W, K = 2, 4, 16, 16, 10

    key = jax.random.PRNGKey(0)
    k1, k2, k3, k4, k5, k6 = jax.random.split(key, 6)
    x = jax.random.normal(k1, (N, C, H, W), jnp.float32) * 2.0 + 0.5
    y = jax.random.normal(k2, (N, K), jnp.float32)
    # Deterministic parameter init (module shapes: Linear(num_classes, num_features))
    w_gamma = jax.random.normal(k3, (C, K), jnp.float32) * 0.1
    w_beta = jax.random.normal(k4, (C, K), jnp.float32) * 0.1
    u_gamma = l2normalize(jax.random.normal(k5, (C,), jnp.float32))
    u_beta = l2normalize(jax.random.normal(k6, (C,), jnp.float32))

    out = conditional_actnorm2d(x, y, w_gamma, w_beta, u_gamma, u_beta)
    out = jax.block_until_ready(out)

    ref = reference(x, y, w_gamma, w_beta, u_gamma, u_beta)
    assert out.shape == (N, C, H, W)
    assert bool(jnp.allclose(out, ref, rtol=1e-4, atol=1e-4))

    print("KERNEL_OK")
</pallas_src>

<mosaic_0001>
module attributes {stable_mosaic.version = 11 : i64} {
  func.func @stats_kernel(%arg0: i32, %arg1: i32, %arg2: memref<8x256xf32, #tpu.memory_space<vmem>>, %arg3: memref<8x1xf32, #tpu.memory_space<vmem>>, %arg4: memref<8x1xf32, #tpu.memory_space<vmem>>) attributes {dimension_semantics = [#tpu.dimension_semantics<parallel>, #tpu.dimension_semantics<arbitrary>], iteration_bounds = array<i64: 1, 1>, scalar_prefetch = 0 : i64, scratch_operands = 0 : i64, tpu.core_type = #tpu.core_type<tc>, window_params = [{transform_indices = @transform_0, window_bounds = array<i64: 8, 256>}, {transform_indices = @transform_1, window_bounds = array<i64: 8, 1>}, {transform_indices = @transform_2, window_bounds = array<i64: 8, 1>}]} {
    %c0_i32 = arith.constant 0 : i32
    %0 = arith.cmpi eq, %arg1, %c0_i32 : i32
    %1 = arith.extui %0 : i1 to i32
    %c0_i32_0 = arith.constant 0 : i32
    %2 = arith.cmpi ne, %1, %c0_i32_0 : i32
    scf.if %2 {
      %cst_11 = arith.constant 0.000000e+00 : f32
      %15 = vector.broadcast %cst_11 : f32 to vector<8x1xf32>
      %c0_12 = arith.constant 0 : index
      %c0_13 = arith.constant 0 : index
      %16 = vector.load %arg3[%c0_12, %c0_13] : memref<8x1xf32, #tpu.memory_space<vmem>>, vector<8x1xf32>
      tpu.vector_store %arg3[%c0_12, %c0_13], %15 {strides = array<i32>} : memref<8x1xf32, #tpu.memory_space<vmem>>, vector<8x1xf32>,
      %cst_14 = arith.constant 0.000000e+00 : f32
      %17 = vector.broadcast %cst_14 : f32 to vector<8x1xf32>
      %c0_15 = arith.constant 0 : index
      %c0_16 = arith.constant 0 : index
      %18 = vector.load %arg4[%c0_15, %c0_16] : memref<8x1xf32, #tpu.memory_space<vmem>>, vector<8x1xf32>
      tpu.vector_store %arg4[%c0_15, %c0_16], %17 {strides = array<i32>} : memref<8x1xf32, #tpu.memory_space<vmem>>, vector<8x1xf32>,
    } else {
    }
    %c0 = arith.constant 0 : index
    %c0_1 = arith.constant 0 : index
    %3 = vector.load %arg2[%c0, %c0_1] : memref<8x256xf32, #tpu.memory_space<vmem>>, vector<8x256xf32>
    %c0_2 = arith.constant 0 : index
    %c0_3 = arith.constant 0 : index
    %4 = vector.load %arg3[%c0_2, %c0_3] : memref<8x1xf32, #tpu.memory_space<vmem>>, vector<8x1xf32>
    %cst = arith.constant dense<0.000000e+00> : vector<8xf32>
    %5 = vector.multi_reduction <add>, %3, %cst [1] : vector<8x256xf32> to vector<8xf32>
    %6 = vector.shape_cast %5 : vector<8xf32> to vector<8x1xf32>
    %7 = arith.addf %4, %6 : vector<8x1xf32>
    %c0_4 = arith.constant 0 : index
    %c0_5 = arith.constant 0 : index
    %8 = vector.load %arg3[%c0_4, %c0_5] : memref<8x1xf32, #tpu.memory_space<vmem>>, vector<8x1xf32>
    tpu.vector_store %arg3[%c0_4, %c0_5], %7 {strides = array<i32>} : memref<8x1xf32, #tpu.memory_space<vmem>>, vector<8x1xf32>,
    %c0_6 = arith.constant 0 : index
    %c0_7 = arith.constant 0 : index
    %9 = vector.load %arg4[%c0_6, %c0_7] : memref<8x1xf32, #tpu.memory_space<vmem>>, vector<8x1xf32>
    %10 = arith.mulf %3, %3 : vector<8x256xf32>
    %cst_8 = arith.constant dense<0.000000e+00> : vector<8xf32>
    %11 = vector.multi_reduction <add>, %10, %cst_8 [1] : vector<8x256xf32> to vector<8xf32>
    %12 = vector.shape_cast %11 : vector<8xf32> to vector<8x1xf32>
    %13 = arith.addf %9, %12 : vector<8x1xf32>
    %c0_9 = arith.constant 0 : index
    %c0_10 = arith.constant 0 : index
    %14 = vector.load %arg4[%c0_9, %c0_10] : memref<8x1xf32, #tpu.memory_space<vmem>>, vector<8x1xf32>
    tpu.vector_store %arg4[%c0_9, %c0_10], %13 {strides = array<i32>} : memref<8x1xf32, #tpu.memory_space<vmem>>, vector<8x1xf32>,
    return
  }
  func.func @transform_0(%arg0: i32, %arg1: i32) -> (i32, i32) {
    %c0_i32 = arith.constant 0 : i32
    return %arg0, %arg1 : i32, i32
  }
  func.func @transform_1(%arg0: i32, %arg1: i32) -> (i32, i32) {
    %c0_i32 = arith.constant 0 : i32
    %c0_i32_0 = arith.constant 0 : i32
    return %arg0, %c0_i32 : i32, i32
  }
  func.func @transform_2(%arg0: i32, %arg1: i32) -> (i32, i32) {
    %c0_i32 = arith.constant 0 : i32
    %c0_i32_0 = arith.constant 0 : i32
    return %arg0, %c0_i32 : i32, i32
  }
}

</mosaic_0001>

<llo_original>
// kernel: tpu_custom_call.1
$region0: #{tpu_custom_call.1}
  #allocation0 [shape = 'u32[]', space=smem, size = 0x4, offset = 0x4, fixed_abs, tag = 'smem constant byte address 0x4 - core index']
  #allocation1 [shape = 'u32[144,128]{1,0:T(1,128)}', space=vmem, size = 0x12000, scoped, tag = 'internal scratch']
  %s0 = inlined_call_operand.hbm [shape: f32[8,256], index: 0, kind: input, shape index: {}]
  %s1 = inlined_call_operand.vmem [shape: f32[8,1], index: 1, kind: output, shape index: {0}]
  %s2 = inlined_call_operand.vmem [shape: f32[8,1], index: 2, kind: output, shape index: {1}]
  %3 = xla_tuple %s1, %s2
  %s4 = sld [smem:[#allocation0]]
  $region30: #{tpu_custom_call.1} parent=0
    _
  %s6 = ssub.s32 1, %s4
  %s7 = scalar_select 0, %s6, %s4
  $region1: #{tpu_custom_call.1} parent=0
    #allocation2 [shape = 'u8[8192]{0}', space=vmem, size = 0x2000, scoped, tag = 'input window, operand 0, single buffered']
    #allocation3 [shape = 's32[1]{0}', space=sflag, size = 0x4, scoped, tag = 'scoped memory for tpu_custom_call.1']
    %8 = vsyncpa [#allocation3], 0
    // Predicated region
    $region2: #{tpu_custom_call.1} parent=1 // pred_check
      _
    $region3: #{tpu_custom_call.1} parent=1 // pred_check_branch
      %10 = sbr.rel (0) target = $region5
    $region4: #{tpu_custom_call.1} parent=1 // pred_region
      %s12 = ssub.s32 256, 256
      %13 = vsyncadd [#allocation3], %s12
      %s15 = sshll.u32 [#allocation2], 4
      %s16 = int_to_ptr.vmem [resolvable:$true] %s15
      %18 = dma.hbm_to_vmem [thread:$0]  %s0, 256, %s16, [#allocation3]
    $region5: #{tpu_custom_call.1} parent=1 // pred_fallthru
      _
    // Predicated region
    $region6: #{tpu_custom_call.1} parent=1 // pred_check
      _
    $region7: #{tpu_custom_call.1} parent=1 // pred_check_branch
      %20 = sbr.rel (0) target = $region9
    $region8: #{tpu_custom_call.1} parent=1 // pred_region
      %21 = dma.done [#allocation3], 256
    $region9: #{tpu_custom_call.1} parent=1 // pred_fallthru
      _
    %p22 = scmp.eq.s32.totalorder 0, 0
    // Predicated region
    $region10: #{tpu_custom_call.1} parent=1 // pred_check
      %p23 = pneg %p22
    $region11: #{tpu_custom_call.1} parent=1 // pred_check_branch
      %25 = sbr.rel (%p23) target = $region13
    $region12: #{tpu_custom_call.1} parent=1 // pred_region
      %vm26 = vcmask 7168
      %27 = vst.msk [vmem:[%s1] sm:$0xff] %vm26, 0.0
      %28 = vst.msk [vmem:[%s2] sm:$0xff] %vm26, 0.0
    $region13: #{tpu_custom_call.1} parent=1 // pred_fallthru
      _
    %v29 = vld [vmem:[#allocation2] sm:$0xff]
    %v30 = vld [vmem:[#allocation2 + $0x8] sm:$0xff]
    %v31 = vld [vmem:[%s1] sm:$0xff]
    %v32 = vadd.f32 %v29, %v30
    %33 = vadd.xlane.f32.xlu0 %v32
    %v34 = vpop.xlane.xlu0 %33
    %v35 = vadd.f32 %v31, %v34
    %vm36 = vcmask 7168
    %37 = vst.msk [vmem:[%s1] sm:$0xff] %vm36, %v35
    %v38 = vld [vmem:[%s2] sm:$0xff]
    %v39 = vmul.f32 %v29, %v29
    %v40 = vmul.f32 %v30, %v30
    %v41 = vadd.f32 %v39, %v40
    %42 = vadd.xlane.f32.xlu0 %v41
    %v43 = vpop.xlane.xlu0 %42
    %v44 = vadd.f32 %v38, %v43
    %45 = vst.msk [vmem:[%s2] sm:$0xff] %vm36, %v44
    // Predicated region
    $region14: #{tpu_custom_call.1} parent=1 // pred_check
      _
    $region15: #{tpu_custom_call.1} parent=1 // pred_check_branch
      %47 = sbr.rel (0) target = $region17
    $region16: #{tpu_custom_call.1} parent=1 // pred_region
      _
    $region17: #{tpu_custom_call.1} parent=1 // pred_fallthru
      _
    // Predicated region
    $region18: #{tpu_custom_call.1} parent=1 // pred_check
      _
    $region19: #{tpu_custom_call.1} parent=1 // pred_check_branch
      %49 = sbr.rel (0) target = $region21
    $region20: #{tpu_custom_call.1} parent=1 // pred_region
      _
    $region21: #{tpu_custom_call.1} parent=1 // pred_fallthru
      _
    // Predicated region
    $region22: #{tpu_custom_call.1} parent=1 // pred_check
      _
    $region23: #{tpu_custom_call.1} parent=1 // pred_check_branch
      %51 = sbr.rel (0) target = $region25
    $region24: #{tpu_custom_call.1} parent=1 // pred_region
      _
    $region25: #{tpu_custom_call.1} parent=1 // pred_fallthru
      _
    // Predicated region
    $region26: #{tpu_custom_call.1} parent=1 // pred_check
      _
    $region27: #{tpu_custom_call.1} parent=1 // pred_check_branch
      %53 = sbr.rel (0) target = $region29
    $region28: #{tpu_custom_call.1} parent=1 // pred_region
      _
    $region29: #{tpu_custom_call.1} parent=1 // pred_fallthru
      _
    %54 = vsyncpa [#allocation3], 1

</llo_original>
